<compile_context>
chip_gen: v7x
topology: tpu7x:2x2x1
jax: 0.10.0
libtpu: 0.0.40
codegen_flags: <defaults>
</compile_context>

<pallas_src>
import numpy as np
import jax
import jax.numpy as jnp
from jax.experimental import pallas as pl
from jax.experimental.pallas import tpu as pltpu


def _round_up(a, m):
    return (a + m - 1) // m * m


def half_periodic_pad(x, p, periodic_direction="x"):
    """Same semantics as HalfPeriodicConv2d.pad; x is NCHW (used by the reference)."""
    if periodic_direction == "x":
        x = jnp.concatenate([x[..., -p:], x, x[..., :p]], axis=-1)        # circular W
        x = jnp.pad(x, ((0, 0), (0, 0), (p, p), (0, 0)))                  # zero H
    elif periodic_direction == "y":
        x = jnp.concatenate([x[:, :, -p:, :], x, x[:, :, :p, :]], axis=2)  # circular H
        x = jnp.pad(x, ((0, 0), (0, 0), (0, 0), (p, p)))                   # zero W
    else:
        raise ValueError("periodic_direction must be x or y")
    return x


def _half_periodic_pad_nhwc(x, p, periodic_direction):
    """Half-periodic pad on an NHWC tensor (wrapper-side layout)."""
    if periodic_direction == "x":      # circular along W (axis 2), zero along H (axis 1)
        x = jnp.concatenate([x[:, :, -p:, :], x, x[:, :, :p, :]], axis=2)
        x = jnp.pad(x, ((0, 0), (p, p), (0, 0), (0, 0)))
    elif periodic_direction == "y":    # circular along H (axis 1), zero along W (axis 2)
        x = jnp.concatenate([x[:, -p:, :, :], x, x[:, :p, :, :]], axis=1)
        x = jnp.pad(x, ((0, 0), (0, 0), (p, p), (0, 0)))
    else:
        raise ValueError("periodic_direction must be x or y")
    return x


def _ds_matmul_kernel(lhs_ref, w_ref, b_ref, o_ref):
    """One fused 3x3 / stride-2 conv tile: (tm, 9C) @ (9C, C) + bias -> (tm, C).

    Single MXU dot, f32 accumulation, no in-kernel reshapes/slices (no relayouts),
    byte-exact (unpadded) output store.
    """
    acc = jnp.dot(lhs_ref[...], w_ref[...], preferred_element_type=jnp.float32)
    o_ref[...] = (acc + b_ref[...]).astype(o_ref.dtype)


def _vmem_capacity_bytes():
    try:
        return int(pltpu.get_tpu_info().vmem_capacity_bytes)
    except Exception:
        return 64 * 1024 * 1024          # conservative (v7x per-TC) fallback


def _choose_tm(M, K, Cout, itemsize):
    """Pick the row-tile size from a generation-dependent VMEM budget."""
    cap = _vmem_capacity_bytes()
    if M <= 8:
        return M, cap
    budget = cap // 2                    # slack for Mosaic internals / pipelining
    lane_k = _round_up(K, 128)           # VMEM (8,128)-tile footprint of a row
    lane_c = _round_up(Cout, 128)
    # double-buffered lhs block + double-buffered out block + f32 matmul result
    per_row = 2 * lane_k * itemsize + 3 * lane_c * 4
    tm = max(8, min(budget // per_row, 8192))
    tm = min((M // 8) * 8, (tm // 8) * 8)
    # >= 4 grid steps when M is large (2 per TensorCore on v7x megacore),
    # >= 2 otherwise so input/output DMAs still overlap with compute.
    min_steps = 4 if M >= 4096 else (2 if M >= 16 else 1)
    if pl.cdiv(M, tm) < min_steps:
        tm = max(8, _round_up(pl.cdiv(M, min_steps), 8))
    return tm, cap


def downsample_block2d(x, weight, bias, periodic_direction="x",
                       compute_dtype=jnp.float32):
    """Forward pass of DownSampleBlock2d.

    x:      (N, C, H, W)   float32, NCHW (PyTorch convention)
    weight: (C, C, 3, 3)   float32, OIHW (PyTorch convention)
    bias:   (C,)           float32
    returns (N, C, Ho, Wo) with Ho = (H-1)//2 + 1, Wo = (W-1)//2 + 1
    """
    N, C, H, W = x.shape
    Cout, Cin, KH, KW = weight.shape
    assert Cin == C and (KH, KW) == (3, 3)
    stride, p = 2, 1
    Ho = (H + 2 * p - KH) // stride + 1
    Wo = (W + 2 * p - KW) // stride + 1
    K = KH * KW * C                       # fused contraction depth (true, unpadded)
    M = N * Ho * Wo

    # ---- glue: NHWC transpose, half-periodic pad, stride-2 im2col (lane-packed K) ----
    # At stride 2 the im2col LHS is only ~2.25x the input bytes; XLA fuses the nine
    # strided gathers + concat into one pass over the padded image, and the kernel
    # then needs zero in-kernel relayout (a single dense matmul).
    xh = jnp.transpose(x, (0, 2, 3, 1))                        # (N, H, W, C)
    xp = _half_periodic_pad_nhwc(xh, p, periodic_direction)    # (N, H+2, W+2, C)
    taps = [xp[:, ky:ky + 2 * Ho - 1:2, kx:kx + 2 * Wo - 1:2, :]
            for ky in range(KH) for kx in range(KW)]           # 9 x (N, Ho, Wo, C)
    lhs = jnp.concatenate(taps, axis=-1)                       # (N, Ho, Wo, 9*C)
    lhs = lhs.reshape(M, K).astype(compute_dtype)              # row-major reshape: free

    # weights (Cout, Cin, 3, 3) -> rows ordered (ky, kx, cin), matching lhs columns
    wk = jnp.transpose(weight, (2, 3, 1, 0)).reshape(K, Cout).astype(compute_dtype)
    b2 = bias.astype(jnp.float32).reshape(1, Cout)

    itemsize = int(np.dtype(compute_dtype).itemsize)
    tm, vmem_cap = _choose_tm(M, K, Cout, itemsize)
    grid = (pl.cdiv(M, tm),)
    # If tm does not divide M, the last step computes on unspecified rows; Pallas
    # masks those output writes, so the result stays correct (minor wasted work).

    cost = pl.CostEstimate(
        flops=2 * M * K * Cout,                                # true (unpadded) dims
        transcendentals=0,
        bytes_accessed=itemsize * (M * K + K * Cout) + 4 * (Cout + M * Cout),
    )

    out = pl.pallas_call(
        _ds_matmul_kernel,
        out_shape=jax.ShapeDtypeStruct((M, Cout), jnp.float32),
        grid=grid,
        in_specs=[
            pl.BlockSpec((tm, K), lambda i: (i, 0)),           # im2col rows
            pl.BlockSpec((K, Cout), lambda i: (0, 0)),         # fused weights
            pl.BlockSpec((1, Cout), lambda i: (0, 0)),         # bias
        ],
        out_specs=pl.BlockSpec((tm, Cout), lambda i: (i, 0)),  # byte-exact output
        compiler_params=pltpu.CompilerParams(
            dimension_semantics=("parallel",),
            vmem_limit_bytes=int(vmem_cap * 3 // 4),
        ),
        cost_estimate=cost,
    )(lhs, wk, b2)

    # TODO(synk): for large C (9*C >> MXU depth) switch back to a per-tap
    # deinterleaved formulation to avoid the ~2.25x im2col HBM inflation.
    return jnp.transpose(out.reshape(N, Ho, Wo, Cout), (0, 3, 1, 2))   # back to NCHW


if __name__ == "__main__":
    key = jax.random.PRNGKey(0)
    N, C, H, W = 2, 4, 16, 16

    kx_key, kw_key, kb_key = jax.random.split(key, 3)
    x = jax.random.normal(kx_key, (N, C, H, W), dtype=jnp.float32)

    # Deterministic parameter init (nn.Conv2d shapes; kaiming-uniform-like bound)
    fan_in = C * 3 * 3
    bound = 1.0 / np.sqrt(fan_in)
    weight = jax.random.uniform(kw_key, (C, C, 3, 3), jnp.float32, -bound, bound)
    bias = jax.random.uniform(kb_key, (C,), jnp.float32, -bound, bound)

    fwd = jax.jit(downsample_block2d,
                  static_argnames=("periodic_direction", "compute_dtype"))

    for direction in ("x", "y"):
        out = jax.block_until_ready(fwd(x, weight, bias, periodic_direction=direction))

        # Independent reference: same half-periodic pad + VALID stride-2 conv via XLA.
        xp_ref = half_periodic_pad(x, 1, direction)
        ref = jax.lax.conv_general_dilated(
            xp_ref, weight, window_strides=(2, 2), padding="VALID",
            dimension_numbers=("NCHW", "OIHW", "NCHW"),
        ) + bias[None, :, None, None]

        assert out.shape == (N, C, (H - 1) // 2 + 1, (W - 1) // 2 + 1), out.shape
        np.testing.assert_allclose(np.asarray(out), np.asarray(ref),
                                   rtol=1e-5, atol=1e-5)

    print("KERNEL_OK")
</pallas_src>

<mosaic_0001>
module attributes {stable_mosaic.version = 11 : i64} {
  func.func @_ds_matmul_kernel(%arg0: i32, %arg1: memref<64x36xf32, #tpu.memory_space<vmem>>, %arg2: memref<36x4xf32, #tpu.memory_space<vmem>>, %arg3: memref<1x4xf32, #tpu.memory_space<vmem>>, %arg4: memref<64x4xf32, #tpu.memory_space<vmem>>) attributes {dimension_semantics = [#tpu.dimension_semantics<parallel>], iteration_bounds = array<i64: 2>, scalar_prefetch = 0 : i64, scratch_operands = 0 : i64, tpu.core_type = #tpu.core_type<tc>, window_params = [{transform_indices = @transform_0, window_bounds = array<i64: 64, 36>}, {pipeline_mode = #tpu.pipeline_mode<synchronous>, transform_indices = @transform_1, window_bounds = array<i64: 36, 4>}, {pipeline_mode = #tpu.pipeline_mode<synchronous>, transform_indices = @transform_2, window_bounds = array<i64: 1, 4>}, {transform_indices = @transform_3, window_bounds = array<i64: 64, 4>}]} {
    %c0 = arith.constant 0 : index
    %c0_0 = arith.constant 0 : index
    %0 = vector.load %arg1[%c0, %c0_0] : memref<64x36xf32, #tpu.memory_space<vmem>>, vector<64x36xf32>
    %c0_1 = arith.constant 0 : index
    %c0_2 = arith.constant 0 : index
    %1 = vector.load %arg2[%c0_1, %c0_2] : memref<36x4xf32, #tpu.memory_space<vmem>>, vector<36x4xf32>
    %cst = arith.constant dense<0.000000e+00> : vector<64x4xf32>
    %2 = tpu.matmul %0, %1, %cst {dimension_numbers = #tpu.dot_dimension_numbers<[1], [0], [0], [1], [0, 0, 1, 1], [], []>} : vector<64x36xf32>, vector<36x4xf32>, vector<64x4xf32> -> vector<64x4xf32>
    %c0_3 = arith.constant 0 : index
    %c0_4 = arith.constant 0 : index
    %3 = vector.load %arg3[%c0_3, %c0_4] : memref<1x4xf32, #tpu.memory_space<vmem>>, vector<1x4xf32>
    %4 = vector.broadcast %3 : vector<1x4xf32> to vector<64x4xf32>
    %5 = arith.addf %2, %4 : vector<64x4xf32>
    %c0_5 = arith.constant 0 : index
    %c0_6 = arith.constant 0 : index
    %6 = vector.load %arg4[%c0_5, %c0_6] : memref<64x4xf32, #tpu.memory_space<vmem>>, vector<64x4xf32>
    tpu.vector_store %arg4[%c0_5, %c0_6], %5 {strides = array<i32>} : memref<64x4xf32, #tpu.memory_space<vmem>>, vector<64x4xf32>,
    return
  }
  func.func @transform_0(%arg0: i32) -> (i32, i32) {
    %c0_i32 = arith.constant 0 : i32
    %c0_i32_0 = arith.constant 0 : i32
    return %arg0, %c0_i32 : i32, i32
  }
  func.func @transform_1(%arg0: i32) -> (i32, i32) {
    %c0_i32 = arith.constant 0 : i32
    %c0_i32_0 = arith.constant 0 : i32
    %c0_i32_1 = arith.constant 0 : i32
    return %c0_i32, %c0_i32_0 : i32, i32
  }
  func.func @transform_2(%arg0: i32) -> (i32, i32) {
    %c0_i32 = arith.constant 0 : i32
    %c0_i32_0 = arith.constant 0 : i32
    %c0_i32_1 = arith.constant 0 : i32
    return %c0_i32, %c0_i32_0 : i32, i32
  }
  func.func @transform_3(%arg0: i32) -> (i32, i32) {
    %c0_i32 = arith.constant 0 : i32
    %c0_i32_0 = arith.constant 0 : i32
    return %arg0, %c0_i32 : i32, i32
  }
}

</mosaic_0001>

<llo_original>
// kernel: downsample_block2d.1
$region0: #{downsample_block2d.1}
  #allocation0 [shape = 'u32[]', space=smem, size = 0x4, offset = 0x4, fixed_abs, tag = 'smem constant byte address 0x4 - core index']
  #allocation1 [shape = 'u32[144,128]{1,0:T(1,128)}', space=vmem, size = 0x12000, scoped, tag = 'internal scratch']
  %s0 = inlined_call_operand.vmem [shape: f32[128,36], index: 0, kind: input, shape index: {}]
  %s1 = inlined_call_operand.vmem [shape: f32[36,4], index: 1, kind: input, shape index: {}]
  %s2 = inlined_call_operand.vmem [shape: f32[1,4], index: 2, kind: input, shape index: {}]
  %s3 = inlined_call_operand.vmem [shape: f32[128,4], index: 3, kind: output, shape index: {}]
  %s4 = sld [smem:[#allocation0]]
  $region45: #{downsample_block2d.1} parent=0
    _
  %s6 = ssub.s32 1, %s4
  %s7 = scalar_select 0, %s6, %s4
  loop: start=0, step=1, limit=4
  $region2: #{downsample_block2d.1} parent=0 // loop_pre_header
    _
  $region3: #{downsample_block2d.1} parent=0 // loop_header
    %s9 = sphi 0, %s13
    %p10 = scmp.ge.s32.totalorder %s9, 4
    %s19 = sphi 0, %s21
    %s22 = sphi 0, %s19
    %s23 = sphi 0, %s22
    %s39 = sphi 0, %s23
    %s43 = sphi 0, %s43
    %s45 = sphi 0, %s43
    %s46 = sphi 0, %s45
    %s60 = sphi 0, %s46
    %s64 = sphi 0, %s64
    %s66 = sphi 0, %s64
    %s67 = sphi 0, %s66
    %s81 = sphi 0, %s67
    %s87 = sphi 0, %s89
    %s90 = sphi 0, %s87
    %s91 = sphi 0, %s90
    %s107 = sphi 0, %s91
  $region4: #{downsample_block2d.1} parent=0 // loop_header_branch
    %12 = sbr.rel (%p10) target = $region8
  $region5: #{downsample_block2d.1} parent=0 // loop_body
    %s14 = ssub.s32 %s9, 1
    %s15 = ssub.s32 %s9, 2
    %s16 = sadd.s32 %s9, 1
    %s17 = ssub.s32 %s9, %s16
    %p18 = scmp.eq.s32.totalorder %s17, 0
    %s20 = sadd.s32 %s19, 1
    %s21 = scalar_select %p18, %s19, %s20
    %p24 = pneg %p18
    %p25 = scmp.eq.s32.totalorder %s9, 1
    %p26 = por %p24, %p25
    %p27 = scmp.ne.s32.totalorder %s19, %s22
    %p28 = scmp.eq.s32.totalorder %s9, 0
    %p29 = por %p27, %p28
    %p30 = scmp.ne.s32.totalorder %s19, %s22
    %p31 = scmp.eq.s32.totalorder %s14, 1
    %p32 = por %p30, %p31
    %p33 = scmp.ne.s32.totalorder %s22, %s23
    %p34 = scmp.eq.s32.totalorder %s14, 0
    %p35 = por %p33, %p34
    %p36 = scmp.ne.s32.totalorder %s22, %s23
    %p37 = scmp.eq.s32.totalorder %s15, 1
    %p38 = por %p36, %p37
    %p40 = scmp.ne.s32.totalorder %s23, %s39
    %p41 = scmp.eq.s32.totalorder %s15, 0
    %p42 = por %p40, %p41
    %s44 = sadd.s32 %s43, 1
    %p47 = scmp.eq.s32.totalorder %s9, 1
    %p48 = scmp.ne.s32.totalorder %s43, %s45
    %p49 = scmp.eq.s32.totalorder %s9, 0
    %p50 = por %p48, %p49
    %p51 = scmp.ne.s32.totalorder %s43, %s45
    %p52 = scmp.eq.s32.totalorder %s14, 1
    %p53 = por %p51, %p52
    %p54 = scmp.ne.s32.totalorder %s45, %s46
    %p55 = scmp.eq.s32.totalorder %s14, 0
    %p56 = por %p54, %p55
    %p57 = scmp.ne.s32.totalorder %s45, %s46
    %p58 = scmp.eq.s32.totalorder %s15, 1
    %p59 = por %p57, %p58
    %p61 = scmp.ne.s32.totalorder %s46, %s60
    %p62 = scmp.eq.s32.totalorder %s15, 0
    %p63 = por %p61, %p62
    %s65 = sadd.s32 %s64, 1
    %p68 = scmp.eq.s32.totalorder %s9, 1
    %p69 = scmp.ne.s32.totalorder %s64, %s66
    %p70 = scmp.eq.s32.totalorder %s9, 0
    %p71 = por %p69, %p70
    %p72 = scmp.ne.s32.totalorder %s64, %s66
    %p73 = scmp.eq.s32.totalorder %s14, 1
    %p74 = por %p72, %p73
    %p75 = scmp.ne.s32.totalorder %s66, %s67
    %p76 = scmp.eq.s32.totalorder %s14, 0
    %p77 = por %p75, %p76
    %p78 = scmp.ne.s32.totalorder %s66, %s67
    %p79 = scmp.eq.s32.totalorder %s15, 1
    %p80 = por %p78, %p79
    %p82 = scmp.ne.s32.totalorder %s67, %s81
    %p83 = scmp.eq.s32.totalorder %s15, 0
    %p84 = por %p82, %p83
    %s85 = ssub.s32 %s9, %s16
    %p86 = scmp.eq.s32.totalorder %s85, 0
    %s88 = sadd.s32 %s87, 1
    %s89 = scalar_select %p86, %s87, %s88
    %p92 = pneg %p86
    %p93 = scmp.eq.s32.totalorder %s9, 1
    %p94 = por %p92, %p93
    %p95 = scmp.ne.s32.totalorder %s87, %s90
    %p96 = scmp.eq.s32.totalorder %s9, 0
    %p97 = por %p95, %p96
    %p98 = scmp.ne.s32.totalorder %s87, %s90
    %p99 = scmp.eq.s32.totalorder %s14, 1
    %p100 = por %p98, %p99
    %p101 = scmp.ne.s32.totalorder %s90, %s91
    %p102 = scmp.eq.s32.totalorder %s14, 0
    %p103 = por %p101, %p102
    %p104 = scmp.ne.s32.totalorder %s90, %s91
    %p105 = scmp.eq.s32.totalorder %s15, 1
    %p106 = por %p104, %p105
    %p108 = scmp.ne.s32.totalorder %s91, %s107
    %p109 = scmp.eq.s32.totalorder %s15, 0
    %p110 = por %p108, %p109
    %p111 = scmp.le.s32.totalorder 1, %s9
    %p112 = scmp.lt.s32.totalorder %s9, 3
    %p113 = pnand %p111, %p112
    %p114 = pneg %p113
    // Predicated region
    $region9: #{downsample_block2d.1} parent=5 // pred_check
      _
    $region10: #{downsample_block2d.1} parent=5 // pred_check_branch
      %116 = sbr.rel (%p113) target = $region12
    $region11: #{downsample_block2d.1} parent=5 // pred_region
      %s117 = ssub.s32 %s9, 1
      // Predicated region
      $region13: #{downsample_block2d.1} parent=11 // pred_check
        %p118 = pneg %p56
      $region14: #{downsample_block2d.1} parent=11 // pred_check_branch
        %120 = sbr.rel (%p118) target = $region16
      $region15: #{downsample_block2d.1} parent=11 // pred_region
        _
      $region16: #{downsample_block2d.1} parent=11 // pred_fallthru
        _
      // Predicated region
      $region17: #{downsample_block2d.1} parent=11 // pred_check
        %p121 = pneg %p77
      $region18: #{downsample_block2d.1} parent=11 // pred_check_branch
        %123 = sbr.rel (%p121) target = $region20
      $region19: #{downsample_block2d.1} parent=11 // pred_region
        _
      $region20: #{downsample_block2d.1} parent=11 // pred_fallthru
        _
    $region12: #{downsample_block2d.1} parent=5 // pred_fallthru
      _
    %p124 = scmp.lt.s32.totalorder %s9, 2
    // Predicated region
    $region21: #{downsample_block2d.1} parent=5 // pred_check
      %p125 = pneg %p124
    $region22: #{downsample_block2d.1} parent=5 // pred_check_branch
      %127 = sbr.rel (%p125) target = $region24
    $region23: #{downsample_block2d.1} parent=5 // pred_region
      // Predicated region
      $region25: #{downsample_block2d.1} parent=23 // pred_check
        %p128 = pneg %p29
      $region26: #{downsample_block2d.1} parent=23 // pred_check_branch
        %130 = sbr.rel (%p128) target = $region28
      $region27: #{downsample_block2d.1} parent=23 // pred_region
        %s131 = smul.u32 8, %s9
        %p132 = scmp.lt.s32.totalorder %s131, 15
        %s133 = scalar_select %p132, %s131, 15
        %s134 = smul.addr %s133, 8
        %s135 = scalar_lea.vmem %s0, %s134
        %s136 = smul.u32 8, %s9
      $region28: #{downsample_block2d.1} parent=23 // pred_fallthru
        _
    $region24: #{downsample_block2d.1} parent=5 // pred_fallthru
      _
    %p137 = scmp.le.s32.totalorder 1, %s9
    %p138 = scmp.lt.s32.totalorder %s9, 3
    %p139 = pnand %p137, %p138
    %p140 = pneg %p139
    // Predicated region
    $region29: #{downsample_block2d.1} parent=5 // pred_check
      _
    $region30: #{downsample_block2d.1} parent=5 // pred_check_branch
      %142 = sbr.rel (%p139) target = $region32
    $region31: #{downsample_block2d.1} parent=5 // pred_region
      %s143 = ssub.s32 %s9, 1
      %s144 = smul.u32 8, %s14
      %p145 = scmp.lt.s32.totalorder %s144, 15
      %s146 = scalar_select %p145, %s144, 15
      %s147 = smul.addr %s146, 8
      %s148 = scalar_lea.vmem %s0, %s147
      %p149 = pneg %p35
      %p150 = pneg %p32
      %p151 = pneg %p56
      %p152 = pneg %p53
      %p153 = pneg %p77
      %p154 = pneg %p74
      %p155 = pneg %p103
      %p156 = pneg %p100
      %s157 = smul.u32 8, %s14
      %p158 = scmp.lt.s32.totalorder %s157, 15
      %s159 = scalar_select %p158, %s157, 15
      %s160 = smul.addr %s159, 8
      %s161 = scalar_lea.vmem %s3, %s160
      %s162 = smul.u32 8, %s14
      %p163 = scmp.lt.s32.totalorder %s162, 15
      %s164 = scalar_select %p163, %s162, 15
      %s165 = smul.addr %s164, 8
      %s166 = scalar_lea.vmem %s0, %s165
      %s167 = smul.u32 8, %s14
      %s168 = smul.u32 8, %s14
      %p169 = scmp.lt.s32.totalorder %s168, 15
      %s170 = scalar_select %p169, %s168, 15
      %s171 = smul.addr %s170, 8
      %s172 = scalar_lea.vmem %s3, %s171
      %s173 = smul.u32 8, %s14
      %v174 = vld [vmem:[%s166] sm:$0xff]
      %v175 = vld [vmem:[%s166 + $0x8] sm:$0xff]
      %v176 = vld [vmem:[%s166 + $0x10] sm:$0xff]
      %v177 = vld [vmem:[%s166 + $0x18] sm:$0xff]
      %v178 = vld [vmem:[%s166 + $0x20] sm:$0xff]
      %v179 = vld [vmem:[%s166 + $0x28] sm:$0xff]
      %v180 = vld [vmem:[%s166 + $0x30] sm:$0xff]
      %v181 = vld [vmem:[%s166 + $0x38] sm:$0xff]
      %v182 = vld [vmem:[%s1] sm:$0xff]
      %v183 = vld [vmem:[%s1 + $0x8] sm:$0xff]
      %v184 = vld [vmem:[%s1 + $0x10] sm:$0xff]
      %v185 = vld [vmem:[%s1 + $0x18] sm:$0xff]
      %v186 = vld [vmem:[%s1 + $0x20] sm:$0xf]
      %v187 = vld [vmem:[%s2] sm:$0x1]
      %v189 = vlaneseq
      %v190 = vshrl.u32 %v189, 7
      %v191 = vsub.s32 0, %v190
      %v192 = vrot.slane %v187, %v191
      %vm194 = vcmask 293888
      %v196 = vsel %vm194, %v174, 0
      %v199 = vsel %vm194, %v175, 0
      %v202 = vsel %vm194, %v176, 0
      %v205 = vsel %vm194, %v177, 0
      %v208 = vsel %vm194, %v178, 0
      %v211 = vsel %vm194, %v179, 0
      %v214 = vsel %vm194, %v180, 0
      %v217 = vsel %vm194, %v181, 0
      %vm219 = vcmask 1043456
      %v221 = vsel %vm219, %v186, 0
      %223 = vmatprep.subr.mxu0 0.0
      %224 = vmatpush1.msra.mxu0 %v182
      %225 = vmatprep.subr.mxu0 0.0
      %226 = vmatpush1.msra.mxu0 %v183
      %227 = vmatprep.subr.mxu0 0.0
      %228 = vmatpush1.msra.mxu0 %v184
      %229 = vmatprep.subr.mxu0 0.0
      %230 = vmatpush1.msra.mxu0 %v185
      %231 = vmatprep.subr.mxu0 0.0
      %232 = vmatpush1.msra.mxu0 %v221
      %233 = vmatprep.subr.mxu0 0.0
      %234 = vmatpush1.msra.mxu0 0.0
      %235 = vmatprep.subr.mxu0 0.0
      %236 = vmatpush1.msra.mxu0 0.0
      %237 = vmatprep.subr.mxu0 0.0
      %238 = vmatpush1.msra.mxu0 0.0
      %239 = vmatprep.subr.mxu0 0.0
      %240 = vmatpush1.msra.mxu0 0.0
      %241 = vmatprep.subr.mxu0 0.0
      %242 = vmatpush1.msra.mxu0 0.0
      %243 = vmatprep.subr.mxu0 0.0
      %244 = vmatpush1.msra.mxu0 0.0
      %245 = vmatprep.subr.mxu0 0.0
      %246 = vmatpush1.msra.mxu0 0.0
      %247 = vmatprep.subr.mxu0 0.0
      %248 = vmatpush1.msra.mxu0 0.0
      %249 = vmatprep.subr.mxu0 0.0
      %250 = vmatpush1.msra.mxu0 0.0
      %251 = vmatprep.subr.mxu0 0.0
      %252 = vmatpush1.msra.mxu0 0.0
      %253 = vmatprep.subr.mxu0 0.0
      %254 = vmatpush1.msra.mxu0 0.0
      %255 = vmatprep.subr.mxu0 0.0
      %256 = vmatpush1.msra.mxu0 0.0
      %257 = vmatprep.subr.mxu0 0.0
      %258 = vmatpush1.msra.mxu0 0.0
      %259 = vmatprep.subr.mxu0 0.0
      %260 = vmatpush1.msra.mxu0 0.0
      %261 = vmatprep.subr.mxu0 0.0
      %262 = vmatpush1.msra.mxu0 0.0
      %263 = vmatprep.subr.mxu0 0.0
      %264 = vmatpush1.msra.mxu0 0.0
      %265 = vmatprep.subr.mxu0 0.0
      %266 = vmatpush1.msra.mxu0 0.0
      %267 = vmatprep.subr.mxu0 0.0
      %268 = vmatpush1.msra.mxu0 0.0
      %269 = vmatprep.subr.mxu0 0.0
      %270 = vmatpush1.msra.mxu0 0.0
      %271 = vmatprep.subr.mxu0 0.0
      %272 = vmatpush1.msra.mxu0 0.0
      %273 = vmatprep.subr.mxu0 0.0
      %274 = vmatpush1.msra.mxu0 0.0
      %275 = vmatprep.subr.mxu0 0.0
      %276 = vmatpush1.msra.mxu0 0.0
      %277 = vmatprep.subr.mxu0 0.0
      %278 = vmatpush1.msra.mxu0 0.0
      %279 = vmatprep.subr.mxu0 0.0
      %280 = vmatpush1.msra.mxu0 0.0
      %281 = vmatprep.subr.mxu0 0.0
      %282 = vmatpush1.msra.mxu0 0.0
      %283 = vmatprep.subr.mxu0 0.0
      %284 = vmatpush1.msra.mxu0 0.0
      %285 = vmatprep.subr.mxu0 0.0
      %286 = vmatpush1.msra.mxu0 0.0
      %287 = vmatprep.mubr.f32.mxu0 0.0
      %288 = vmatmul.mubr.f32.gmra.mrb[0].mxu0 %v196
      %v289 = vpop.f32.mrb[0].mxu0
      %v290 = vadd.f32 %v192, %v289
      %v291 = vpop.f32.mrb[0].mxu0
      %292 = vmatprep.mubr.f32.mxu0 0.0
      %293 = vmatmul.mubr.f32.gmra.mrb[0].mxu0 %v199
      %v294 = vpop.f32.mrb[0].mxu0
      %v295 = vadd.f32 %v192, %v294
      %v296 = vpop.f32.mrb[0].mxu0
      %297 = vmatprep.mubr.f32.mxu0 0.0
      %298 = vmatmul.mubr.f32.gmra.mrb[0].mxu0 %v202
      %v299 = vpop.f32.mrb[0].mxu0
      %v300 = vadd.f32 %v192, %v299
      %v301 = vpop.f32.mrb[0].mxu0
      %302 = vmatprep.mubr.f32.mxu0 0.0
      %303 = vmatmul.mubr.f32.gmra.mrb[0].mxu0 %v205
      %v304 = vpop.f32.mrb[0].mxu0
      %v305 = vadd.f32 %v192, %v304
      %v306 = vpop.f32.mrb[0].mxu0
      %307 = vmatprep.mubr.f32.mxu0 0.0
      %308 = vmatmul.mubr.f32.gmra.mrb[0].mxu0 %v208
      %v309 = vpop.f32.mrb[0].mxu0
      %v310 = vadd.f32 %v192, %v309
      %v311 = vpop.f32.mrb[0].mxu0
      %312 = vmatprep.mubr.f32.mxu0 0.0
      %313 = vmatmul.mubr.f32.gmra.mrb[0].mxu0 %v211
      %v314 = vpop.f32.mrb[0].mxu0
      %v315 = vadd.f32 %v192, %v314
      %v316 = vpop.f32.mrb[0].mxu0
      %317 = vmatprep.mubr.f32.mxu0 0.0
      %318 = vmatmul.mubr.f32.gmra.mrb[0].mxu0 %v214
      %v319 = vpop.f32.mrb[0].mxu0
      %v320 = vadd.f32 %v192, %v319
      %v321 = vpop.f32.mrb[0].mxu0
      %322 = vmatprep.mubr.f32.mxu0 0.0
      %323 = vmatmul.mubr.f32.gmra.mrb[0].mxu0 %v217
      %v324 = vpop.f32.mrb[0].mxu0
      %v325 = vadd.f32 %v192, %v324
      %v326 = vpop.f32.mrb[0].mxu0
      %327 = vdwg.mxu0
      %vm328 = vcmask 31744
      %329 = vst.msk [vmem:[%s172] sm:$0xff] %vm328, %v290
      %330 = vst.msk [vmem:[%s172 + $0x8] sm:$0xff] %vm328, %v295
      %331 = vst.msk [vmem:[%s172 + $0x10] sm:$0xff] %vm328, %v300
      %332 = vst.msk [vmem:[%s172 + $0x18] sm:$0xff] %vm328, %v305
      %333 = vst.msk [vmem:[%s172 + $0x20] sm:$0xff] %vm328, %v310
      %334 = vst.msk [vmem:[%s172 + $0x28] sm:$0xff] %vm328, %v315
      %335 = vst.msk [vmem:[%s172 + $0x30] sm:$0xff] %vm328, %v320
      %336 = vst.msk [vmem:[%s172 + $0x38] sm:$0xff] %vm328, %v325
      %s337 = smul.u32 8, %s14
      %p338 = scmp.lt.s32.totalorder %s337, 15
      %s339 = scalar_select %p338, %s337, 15
      %s340 = smul.addr %s339, 8
      %s341 = scalar_lea.vmem %s3, %s340
      // Predicated region
      $region33: #{downsample_block2d.1} parent=31 // pred_check
        %p342 = pneg %p100
      $region34: #{downsample_block2d.1} parent=31 // pred_check_branch
        %344 = sbr.rel (%p342) target = $region36
      $region35: #{downsample_block2d.1} parent=31 // pred_region
        %s345 = smul.u32 8, %s14
      $region36: #{downsample_block2d.1} parent=31 // pred_fallthru
        _
    $region32: #{downsample_block2d.1} parent=5 // pred_fallthru
      _
    %p346 = scmp.le.s32.totalorder 2, %s9
    // Predicated region
    $region37: #{downsample_block2d.1} parent=5 // pred_check
      %p347 = pneg %p346
    $region38: #{downsample_block2d.1} parent=5 // pred_check_branch
      %349 = sbr.rel (%p347) target = $region40
    $region39: #{downsample_block2d.1} parent=5 // pred_region
      %s350 = ssub.s32 %s9, 2
      // Predicated region
      $region41: #{downsample_block2d.1} parent=39 // pred_check
        %p351 = pneg %p106
      $region42: #{downsample_block2d.1} parent=39 // pred_check_branch
        %353 = sbr.rel (%p351) target = $region44
      $region43: #{downsample_block2d.1} parent=39 // pred_region
        %s354 = smul.u32 8, %s15
        %p355 = scmp.lt.s32.totalorder %s354, 15
        %s356 = scalar_select %p355, %s354, 15
        %s357 = smul.addr %s356, 8
        %s358 = scalar_lea.vmem %s3, %s357
      $region44: #{downsample_block2d.1} parent=39 // pred_fallthru
        _
    $region40: #{downsample_block2d.1} parent=5 // pred_fallthru
      _
  $region6: #{downsample_block2d.1} parent=0 // loop_footer
    %s13 = sadd.s32 1, %s9
  $region7: #{downsample_block2d.1} parent=0 // loop_footer_branch
    %8 = sbr.rel target = $region3
  $region8: #{downsample_block2d.1} parent=0 // loop_exit
    _

</llo_original>
